<compile_context>
chip_gen: v6e
topology: v6e:2x2x1
jax: 0.10.0
libtpu: 0.0.40
codegen_flags: <defaults>
</compile_context>

<pallas_src>
import math

import jax
import jax.numpy as jnp
from jax.experimental import pallas as pl
from jax.experimental.pallas import tpu as pltpu


def _bee_kernel(p10_ref, bee_ref, flower_ref, rand_ref, out_ref):
    # p10_ref holds 10 * p_eat as a (1,1) f32 scalar in SMEM.
    p10 = p10_ref[0, 0]
    bee = bee_ref[...].astype(jnp.float32)
    flower = flower_ref[...].astype(jnp.float32)
    rand = rand_ref[...].astype(jnp.float32)

    gate = jax.nn.sigmoid(rand * 10.0 - p10)          # EUP
    # flower * (1 + bee*(gate-1)) == bee*flower*gate + (1-bee)*flower
    out = flower * (1.0 + bee * (gate - 1.0))
    out_ref[...] = out.astype(out_ref.dtype)


def differentiable_bee_forward(bee_position, flower_position, input_rand, p_eat,
                               *, lane_width=1024, block_rows=256):
    """Elementwise bee/flower forward. Inputs may be any (matching) shape."""
    assert bee_position.shape == flower_position.shape == input_rand.shape
    assert lane_width % 128 == 0 and block_rows % 8 == 0

    orig_shape = bee_position.shape
    dtype = bee_position.dtype
    total = math.prod(orig_shape) if orig_shape else 1

    # ---- choose slab layout: lane-dense wide last dim, pad ragged sizes ----
    rows = pl.cdiv(total, lane_width)
    if rows <= block_rows:
        # Tiny input: single full-array block, one grid step, one DMA each way.
        rows_padded = rows
        grid = (1,)
        block_shape = (rows_padded, lane_width)
    else:
        rows_padded = pl.cdiv(rows, block_rows) * block_rows
        grid = (rows_padded // block_rows,)
        block_shape = (block_rows, lane_width)

    padded_total = rows_padded * lane_width
    pad = padded_total - total

    def to_slab(x):
        flat = x.reshape(total)
        if pad:
            flat = jnp.pad(flat, (0, pad))
        return flat.reshape(rows_padded, lane_width)

    bee2 = to_slab(bee_position)
    flo2 = to_slab(flower_position)
    rnd2 = to_slab(input_rand)
    p10 = (jnp.asarray(p_eat, dtype=jnp.float32) * 10.0).reshape(1, 1)

    data_spec = pl.BlockSpec(block_shape, lambda i: (i, 0))

    out2 = pl.pallas_call(
        _bee_kernel,
        out_shape=jax.ShapeDtypeStruct((rows_padded, lane_width), dtype),
        grid=grid,
        in_specs=[
            pl.BlockSpec(memory_space=pltpu.SMEM),   # 10*p_eat scalar
            data_spec,                               # bee
            data_spec,                               # flower
            data_spec,                               # rand
        ],
        out_specs=data_spec,
        compiler_params=pltpu.CompilerParams(
            dimension_semantics=("parallel",)),
    )(p10, bee2, flo2, rnd2)

    out_flat = out2.reshape(padded_total)
    if pad:
        out_flat = out_flat[:total]
    return out_flat.reshape(orig_shape)


def _reference(bee, flower, rand, p_eat):
    return bee * flower * jax.nn.sigmoid((rand - p_eat) * 10.0) + (1.0 - bee) * flower


if __name__ == "__main__":
    key = jax.random.PRNGKey(0)
    k1, k2, k3 = jax.random.split(key, 3)

    # Small shape consistent with an elementwise forward: [batch, ch, H, W]
    shape = (2, 4, 16, 16)
    bee_position = jax.random.uniform(k1, shape, dtype=jnp.float32)
    flower_position = jax.random.uniform(k2, shape, dtype=jnp.float32)
    input_rand = jax.random.uniform(k3, shape, dtype=jnp.float32)

    # Deterministic parameter init (matches nn.Parameter(torch.tensor(0.5))).
    p_eat = jnp.float32(0.5)

    out = differentiable_bee_forward(bee_position, flower_position, input_rand, p_eat)
    out = jax.block_until_ready(out)

    ref = _reference(bee_position, flower_position, input_rand, p_eat)
    assert out.shape == shape
    assert jnp.allclose(out, ref, atol=1e-5, rtol=1e-5), "mismatch vs reference"

    # Also exercise the multi-block, padded path with a larger ragged shape.
    big_shape = (3, 5, 123, 130)   # 239,850 elems: not a multiple of 128
    kb1, kb2, kb3 = jax.random.split(jax.random.PRNGKey(1), 3)
    b_bee = jax.random.uniform(kb1, big_shape, dtype=jnp.float32)
    b_flo = jax.random.uniform(kb2, big_shape, dtype=jnp.float32)
    b_rnd = jax.random.uniform(kb3, big_shape, dtype=jnp.float32)
    big_out = jax.block_until_ready(
        differentiable_bee_forward(b_bee, b_flo, b_rnd, p_eat))
    big_ref = _reference(b_bee, b_flo, b_rnd, p_eat)
    assert jnp.allclose(big_out, big_ref, atol=1e-5, rtol=1e-5), "mismatch (big)"

    print("KERNEL_OK")
</pallas_src>

<mosaic_0001>
module attributes {stable_mosaic.version = 11 : i64} {
  func.func @_bee_kernel(%arg0: i32, %arg1: memref<1x1xf32, #tpu.memory_space<smem>>, %arg2: memref<2x1024xf32, #tpu.memory_space<vmem>>, %arg3: memref<2x1024xf32, #tpu.memory_space<vmem>>, %arg4: memref<2x1024xf32, #tpu.memory_space<vmem>>, %arg5: memref<2x1024xf32, #tpu.memory_space<vmem>>) attributes {dimension_semantics = [#tpu.dimension_semantics<parallel>], iteration_bounds = array<i64: 1>, scalar_prefetch = 0 : i64, scratch_operands = 0 : i64, tpu.core_type = #tpu.core_type<tc>, window_params = [{transform_indices = @transform_0, window_bounds = array<i64: 1, 1>}, {transform_indices = @transform_1, window_bounds = array<i64: 2, 1024>}, {transform_indices = @transform_2, window_bounds = array<i64: 2, 1024>}, {transform_indices = @transform_3, window_bounds = array<i64: 2, 1024>}, {transform_indices = @transform_4, window_bounds = array<i64: 2, 1024>}]} {
    %c0 = arith.constant 0 : index
    %c0_0 = arith.constant 0 : index
    %0 = memref.load %arg1[%c0, %c0_0] : memref<1x1xf32, #tpu.memory_space<smem>>
    %c0_1 = arith.constant 0 : index
    %c0_2 = arith.constant 0 : index
    %1 = vector.load %arg2[%c0_1, %c0_2] : memref<2x1024xf32, #tpu.memory_space<vmem>>, vector<2x1024xf32>
    %c0_3 = arith.constant 0 : index
    %c0_4 = arith.constant 0 : index
    %2 = vector.load %arg3[%c0_3, %c0_4] : memref<2x1024xf32, #tpu.memory_space<vmem>>, vector<2x1024xf32>
    %c0_5 = arith.constant 0 : index
    %c0_6 = arith.constant 0 : index
    %3 = vector.load %arg4[%c0_5, %c0_6] : memref<2x1024xf32, #tpu.memory_space<vmem>>, vector<2x1024xf32>
    %cst = arith.constant 1.000000e+01 : f32
    %4 = vector.broadcast %cst : f32 to vector<2x1024xf32>
    %5 = arith.mulf %3, %4 : vector<2x1024xf32>
    %6 = vector.broadcast %0 : f32 to vector<2x1024xf32>
    %7 = arith.subf %5, %6 : vector<2x1024xf32>
    %8 = arith.negf %7 : vector<2x1024xf32>
    %9 = math.exp %8 : vector<2x1024xf32>
    %cst_7 = arith.constant 1.000000e+00 : f32
    %10 = vector.broadcast %cst_7 : f32 to vector<2x1024xf32>
    %11 = arith.addf %10, %9 : vector<2x1024xf32>
    %12 = arith.divf %10, %11 : vector<2x1024xf32>
    %cst_8 = arith.constant 1.000000e+00 : f32
    %13 = vector.broadcast %cst_8 : f32 to vector<2x1024xf32>
    %14 = arith.subf %12, %13 : vector<2x1024xf32>
    %15 = arith.mulf %1, %14 : vector<2x1024xf32>
    %cst_9 = arith.constant 1.000000e+00 : f32
    %16 = vector.broadcast %cst_9 : f32 to vector<2x1024xf32>
    %17 = arith.addf %16, %15 : vector<2x1024xf32>
    %18 = arith.mulf %2, %17 : vector<2x1024xf32>
    %c0_10 = arith.constant 0 : index
    %c0_11 = arith.constant 0 : index
    %19 = vector.load %arg5[%c0_10, %c0_11] : memref<2x1024xf32, #tpu.memory_space<vmem>>, vector<2x1024xf32>
    tpu.vector_store %arg5[%c0_10, %c0_11], %18 {strides = array<i32>} : memref<2x1024xf32, #tpu.memory_space<vmem>>, vector<2x1024xf32>,
    return
  }
  func.func @transform_0(%arg0: i32) -> (i32, i32) {
    %c0_i32 = arith.constant 0 : i32
    %c0_i32_0 = arith.constant 0 : i32
    %c0_i32_1 = arith.constant 0 : i32
    return %c0_i32, %c0_i32_0 : i32, i32
  }
  func.func @transform_1(%arg0: i32) -> (i32, i32) {
    %c0_i32 = arith.constant 0 : i32
    %c0_i32_0 = arith.constant 0 : i32
    return %arg0, %c0_i32 : i32, i32
  }
  func.func @transform_2(%arg0: i32) -> (i32, i32) {
    %c0_i32 = arith.constant 0 : i32
    %c0_i32_0 = arith.constant 0 : i32
    return %arg0, %c0_i32 : i32, i32
  }
  func.func @transform_3(%arg0: i32) -> (i32, i32) {
    %c0_i32 = arith.constant 0 : i32
    %c0_i32_0 = arith.constant 0 : i32
    return %arg0, %c0_i32 : i32, i32
  }
  func.func @transform_4(%arg0: i32) -> (i32, i32) {
    %c0_i32 = arith.constant 0 : i32
    %c0_i32_0 = arith.constant 0 : i32
    return %arg0, %c0_i32 : i32, i32
  }
}

</mosaic_0001>

<llo_original>
// kernel: tpu_custom_call.1
$region0: #{tpu_custom_call.1}
  #allocation0 [shape = 'u32[]', space=smem, size = 0x4, offset = 0x4, fixed_abs, tag = 'smem constant byte address 0x4 - core index']
  #allocation1 [shape = 'u32[144,128]{1,0:T(1,128)}', space=vmem, size = 0x12000, scoped, tag = 'internal scratch']
  #allocation2 [shape = 'f32[1,1]{1,0:T(1,128)S(6)}', space=smem, size = 0x200, scoped, tag = 'scoped memory for tpu_custom_call.1']
  %s0 = inlined_call_operand.<no memory space> [shape: f32[1,1], index: 0, kind: input, shape index: {}]
  %s1 = inlined_call_operand.hbm [shape: f32[2,1024], index: 1, kind: input, shape index: {}]
  %s2 = inlined_call_operand.hbm [shape: f32[2,1024], index: 2, kind: input, shape index: {}]
  %s3 = inlined_call_operand.hbm [shape: f32[2,1024], index: 3, kind: input, shape index: {}]
  %s4 = inlined_call_operand.hbm [shape: f32[2,1024], index: 4, kind: output, shape index: {}]
  %s5 = sld [smem:[#allocation0]]
  $region38: #{tpu_custom_call.1} parent=0
    _
  %s7 = ssub.s32 1, %s5
  %s8 = scalar_select 0, %s7, %s5
  %9 = sst [smem:[#allocation2]] %s0
  $region1: #{tpu_custom_call.1} parent=0
    #allocation3 [shape = 'u8[8192]{0}', space=vmem, size = 0x2000, scoped, tag = 'input window, operand 1, single buffered']
    #allocation4 [shape = 's32[1]{0}', space=sflag, size = 0x4, scoped, tag = 'scoped memory for tpu_custom_call.1']
    #allocation5 [shape = 's32[1]{0}', space=sflag, size = 0x4, scoped, tag = 'scoped memory for tpu_custom_call.1']
    #allocation6 [shape = 'u8[8192]{0}', space=vmem, size = 0x2000, scoped, tag = 'input window, operand 2, single buffered']
    #allocation7 [shape = 's32[1]{0}', space=sflag, size = 0x4, scoped, tag = 'scoped memory for tpu_custom_call.1']
    #allocation8 [shape = 'u8[8192]{0}', space=vmem, size = 0x2000, scoped, tag = 'input window, operand 3, single buffered']
    #allocation9 [shape = 'u8[8192]{0}', space=vmem, size = 0x2000, scoped, tag = 'output window, operand 0, single buffered']
    %10 = vsyncpa [#allocation4], 0
    %11 = vsyncpa [#allocation7], 0
    %12 = vsyncpa [#allocation5], 0
    // Predicated region
    $region2: #{tpu_custom_call.1} parent=1 // pred_check
      _
    $region3: #{tpu_custom_call.1} parent=1 // pred_check_branch
      %14 = sbr.rel (0) target = $region5
    $region4: #{tpu_custom_call.1} parent=1 // pred_region
      _
    $region5: #{tpu_custom_call.1} parent=1 // pred_fallthru
      _
    // Predicated region
    $region6: #{tpu_custom_call.1} parent=1 // pred_check
      _
    $region7: #{tpu_custom_call.1} parent=1 // pred_check_branch
      %16 = sbr.rel (0) target = $region9
    $region8: #{tpu_custom_call.1} parent=1 // pred_region
      %s18 = ssub.s32 256, 256
      %19 = vsyncadd [#allocation4], %s18
      %s21 = sshll.u32 [#allocation3], 4
      %s22 = int_to_ptr.vmem [resolvable:$true] %s21
      %24 = dma.hbm_to_vmem [thread:$0]  %s1, 256, %s22, [#allocation4]
    $region9: #{tpu_custom_call.1} parent=1 // pred_fallthru
      _
    // Predicated region
    $region10: #{tpu_custom_call.1} parent=1 // pred_check
      _
    $region11: #{tpu_custom_call.1} parent=1 // pred_check_branch
      %26 = sbr.rel (0) target = $region13
    $region12: #{tpu_custom_call.1} parent=1 // pred_region
      %s28 = ssub.s32 256, 256
      %29 = vsyncadd [#allocation7], %s28
      %s31 = sshll.u32 [#allocation6], 4
      %s32 = int_to_ptr.vmem [resolvable:$true] %s31
      %34 = dma.hbm_to_vmem [thread:$0]  %s2, 256, %s32, [#allocation7]
    $region13: #{tpu_custom_call.1} parent=1 // pred_fallthru
      _
    // Predicated region
    $region14: #{tpu_custom_call.1} parent=1 // pred_check
      _
    $region15: #{tpu_custom_call.1} parent=1 // pred_check_branch
      %36 = sbr.rel (0) target = $region17
    $region16: #{tpu_custom_call.1} parent=1 // pred_region
      %s38 = ssub.s32 256, 256
      %39 = vsyncadd [#allocation7], %s38
      %s41 = sshll.u32 [#allocation8], 4
      %s42 = int_to_ptr.vmem [resolvable:$true] %s41
      %44 = dma.hbm_to_vmem [thread:$0]  %s3, 256, %s42, [#allocation7]
    $region17: #{tpu_custom_call.1} parent=1 // pred_fallthru
      _
    // Predicated region
    $region18: #{tpu_custom_call.1} parent=1 // pred_check
      _
    $region19: #{tpu_custom_call.1} parent=1 // pred_check_branch
      %46 = sbr.rel (0) target = $region21
    $region20: #{tpu_custom_call.1} parent=1 // pred_region
      %47 = dma.done [#allocation4], 256
    $region21: #{tpu_custom_call.1} parent=1 // pred_fallthru
      _
    // Predicated region
    $region22: #{tpu_custom_call.1} parent=1 // pred_check
      _
    $region23: #{tpu_custom_call.1} parent=1 // pred_check_branch
      %49 = sbr.rel (0) target = $region25
    $region24: #{tpu_custom_call.1} parent=1 // pred_region
      %50 = dma.done [#allocation7], 256
    $region25: #{tpu_custom_call.1} parent=1 // pred_fallthru
      _
    // Predicated region
    $region26: #{tpu_custom_call.1} parent=1 // pred_check
      _
    $region27: #{tpu_custom_call.1} parent=1 // pred_check_branch
      %52 = sbr.rel (0) target = $region29
    $region28: #{tpu_custom_call.1} parent=1 // pred_region
      %53 = dma.done [#allocation7], 256
    $region29: #{tpu_custom_call.1} parent=1 // pred_fallthru
      _
    %s54 = sld [smem:[#allocation2]]
    %v55 = vld [vmem:[#allocation3] sm:$0xff]
    %v56 = vld [vmem:[#allocation3 + $0x8] sm:$0xff]
    %v57 = vld [vmem:[#allocation6] sm:$0xff]
    %v58 = vld [vmem:[#allocation6 + $0x8] sm:$0xff]
    %v59 = vld [vmem:[#allocation8] sm:$0xff]
    %v60 = vld [vmem:[#allocation8 + $0x8] sm:$0xff]
    %v61 = vmul.f32 %v59, 10.0
    %v62 = vmul.f32 %v60, 10.0
    %v63 = vstv %s54
    %v64 = vsub.f32 %v61, %v63
    %v65 = vsub.f32 %v62, %v63
    %v66 = vxor.u32 %v64, 2147483648
    %v67 = vxor.u32 %v65, 2147483648
    %v68 = vmul.f32 %v66, 1.442695
    %v69 = vpow.pop %v68
    %v70 = vmul.f32 %v67, 1.442695
    %v71 = vpow.pop %v70
    %v72 = vadd.f32 %v69, 1.0
    %v73 = vadd.f32 %v71, 1.0
    %v74 = vrcp.pop %v72
    %v75 = vmul.f32 1.0, %v74
    %v76 = vrcp.pop %v73
    %v77 = vmul.f32 1.0, %v76
    %v78 = vsub.f32 %v75, 1.0
    %v79 = vsub.f32 %v77, 1.0
    %v80 = vmul.f32 %v55, %v78
    %v81 = vmul.f32 %v56, %v79
    %v82 = vadd.f32 %v80, 1.0
    %v83 = vadd.f32 %v81, 1.0
    %v84 = vmul.f32 %v57, %v82
    %v85 = vmul.f32 %v58, %v83
    %86 = vst [vmem:[#allocation9] sm:$0xff] %v84
    %87 = vst [vmem:[#allocation9 + $0x8] sm:$0xff] %v85
    // Predicated region
    $region30: #{tpu_custom_call.1} parent=1 // pred_check
      _
    $region31: #{tpu_custom_call.1} parent=1 // pred_check_branch
      %89 = sbr.rel (0) target = $region33
    $region32: #{tpu_custom_call.1} parent=1 // pred_region
      %s91 = ssub.s32 256, 256
      %92 = vsyncadd [#allocation5], %s91
      %s94 = sshll.u32 [#allocation9], 4
      %s95 = int_to_ptr.vmem [resolvable:$true] %s94
      %97 = dma.vmem_to_hbm [thread:$0]  %s95, 256, %s4, [#allocation5]
    $region33: #{tpu_custom_call.1} parent=1 // pred_fallthru
      _
    // Predicated region
    $region34: #{tpu_custom_call.1} parent=1 // pred_check
      _
    $region35: #{tpu_custom_call.1} parent=1 // pred_check_branch
      %99 = sbr.rel (0) target = $region37
    $region36: #{tpu_custom_call.1} parent=1 // pred_region
      %100 = dma.done [#allocation5], 256
    $region37: #{tpu_custom_call.1} parent=1 // pred_fallthru
      _
    %101 = vsyncpa [#allocation4], 1
    %102 = vsyncpa [#allocation7], 1
    %103 = vsyncpa [#allocation5], 1

</llo_original>
